<compile_context>
chip_gen: v7x
topology: tpu7x:2x2x1
jax: 0.10.0
libtpu: 0.0.40
codegen_flags: <defaults>
</compile_context>

<pallas_src>
import jax
import jax.numpy as jnp
from jax.experimental import pallas as pl
from jax.experimental.pallas import tpu as pltpu


# ----------------------------------------------------------------------------
# Fused Pallas kernel: one (batch, pixel-block) tile per grid step
# ----------------------------------------------------------------------------
def _initial_block_kernel(p_ref, w_ref, bn_ref, o_ref):
    """Conv(3x3,s2,p1) + MaxPool(2x2,s2) + concat + BN(eval) + PReLU, fully fused.

    p_ref : (1, 27, Mb) bf16  patch slab; row = tap*cin + c, col = output pixel
    w_ref : (13, 27)    bf16  conv weights, tap*cin-major, BN scale folded in
    bn_ref: (16, 3)     f32   per-channel [scale, shift, alpha], channels on sublane
    o_ref : (1, 16, Mb) f32   output tile (channels on sublane, pixels on lanes)
    """
    cm = w_ref.shape[0]                 # main-branch channels = 13
    cin = bn_ref.shape[0] - cm          # ext-branch channels  = 3 (= input channels)

    p = p_ref[0]                        # (27, Mb) bf16, stays in VMEM/vregs

    # main branch: 3x3 / stride-2 conv as ONE K=27 MXU dot, f32 accumulation.
    main = jnp.dot(w_ref[...], p, preferred_element_type=jnp.float32)   # (13, Mb)

    # ext branch: 2x2 / stride-2 maxpool == max over patch taps (1,1),(1,2),(2,1),(2,2)
    # (those taps read exactly the un-padded 2x2 pool window; max is exact up to the
    #  monotone bf16 input cast).
    def tap(t):
        return p[t * cin:(t + 1) * cin, :]                              # (3, Mb)

    ext = jnp.maximum(jnp.maximum(tap(4), tap(5)),
                      jnp.maximum(tap(7), tap(8))).astype(jnp.float32)  # (3, Mb)

    scale = bn_ref[:, 0:1]              # (16, 1) -- broadcast along lanes
    shift = bn_ref[:, 1:2]
    alpha = bn_ref[:, 2:3]

    # concat(main, ext) + folded BatchNorm + PReLU; BN scale for the conv channels is
    # already folded into w_ref, so only the shift remains there.
    y = jnp.concatenate(
        [main + shift[:cm, :],
         ext * scale[cm:, :] + shift[cm:, :]], axis=0)                  # (16, Mb)

    # single full-width, lane-dense store
    o_ref[0] = jnp.where(y >= 0.0, y, alpha * y)


def _choose_col_block(m):
    """Pick pixels-per-program: lane-dense (multiple of 128), big enough to amortize
    per-step overhead (~0.35us), but keep >=2 programs when the problem allows it so
    v7x's second TensorCore stays busy."""
    if m % 128 == 0:
        for cand in (2048, 1024, 512, 256, 128):
            if m % cand == 0 and m // cand >= 2:
                return cand
    return m   # tiny / odd problems: whole spatial extent per (batch) program


# ----------------------------------------------------------------------------
# Wrapper
# ----------------------------------------------------------------------------
def initial_block_forward(x_nchw, params):
    """InitialBlock forward. x_nchw: (B, 3, H, W) like the PyTorch module; returns NCHW."""
    w_oihw = params['w']                       # (13, 3, 3, 3) OIHW, bias=False
    scale, shift, alpha = params['scale'], params['shift'], params['alpha']
    cm = w_oihw.shape[0]                       # 13
    cin = w_oihw.shape[1]                      # 3
    ctot = scale.shape[0]                      # 16

    x = x_nchw.astype(jnp.float32)
    B, _, H, W = x.shape
    assert H % 2 == 0 and W % 2 == 0, "InitialBlock needs even spatial dims"
    Ho, Wo = H // 2, W // 2
    M = Ho * Wo

    # --- layout plumbing (one fused XLA pass): pad + stride-2 tap gather ----------
    # Patch rows are (tap, cin)-major; columns are output pixels (oh*Wo + ow).
    # bf16 so the slab is ~= the f32 input in HBM bytes (27*2 vs 3*4*4 B / out pixel).
    xp = jnp.pad(x, ((0, 0), (0, 0), (1, 1), (1, 1)))
    taps = [xp[:, :, i:i + 2 * Ho:2, j:j + 2 * Wo:2]       # (B, cin, Ho, Wo)
            for i in range(3) for j in range(3)]
    patch = jnp.stack(taps, axis=1).reshape(B, 9 * cin, M).astype(jnp.bfloat16)

    # Weights: OIHW -> (cout, tap*cin) with eval-mode BN scale folded in, bf16 for MXU.
    w_flat = jnp.transpose(w_oihw, (0, 2, 3, 1)).reshape(cm, 9 * cin)
    w_flat = (w_flat * scale[:cm, None]).astype(jnp.bfloat16)

    # Per-channel epilogue params, channels on sublane: [:,0]=scale,[:,1]=shift,[:,2]=alpha
    bn = jnp.stack([scale, shift, alpha], axis=1).astype(jnp.float32)   # (16, 3)

    Mb = _choose_col_block(M)
    grid = (B, M // Mb)

    out = pl.pallas_call(
        _initial_block_kernel,
        out_shape=jax.ShapeDtypeStruct((B, ctot, M), jnp.float32),
        grid=grid,
        in_specs=[pl.BlockSpec((1, 9 * cin, Mb), lambda b, m: (b, 0, m)),
                  pl.BlockSpec((cm, 9 * cin), lambda b, m: (0, 0)),
                  pl.BlockSpec((ctot, 3), lambda b, m: (0, 0))],
        out_specs=pl.BlockSpec((1, ctot, Mb), lambda b, m: (b, 0, m)),
        compiler_params=pltpu.CompilerParams(
            dimension_semantics=("parallel", "parallel"),   # both TCs on v7x
            vmem_limit_bytes=32 * 1024 * 1024),
    )(patch, w_flat, bn)

    # (B, 16, Ho*Wo) -> (B, 16, Ho, Wo): pure metadata reshape, already NCHW,
    # channel order = torch.cat((main, ext), 1).
    return out.reshape(B, ctot, Ho, Wo)


# ----------------------------------------------------------------------------
# Deterministic synthetic parameters (BatchNorm folded to eval-mode affine)
# ----------------------------------------------------------------------------
def init_params(key):
    k1, k2, k3, k4, k5, k6 = jax.random.split(key, 6)
    w = 0.1 * jax.random.normal(k1, (13, 3, 3, 3), jnp.float32)    # OIHW
    gamma = jax.random.uniform(k2, (16,), jnp.float32, 0.5, 1.5)
    beta = 0.1 * jax.random.normal(k3, (16,), jnp.float32)
    mean = 0.1 * jax.random.normal(k4, (16,), jnp.float32)
    var = jax.random.uniform(k5, (16,), jnp.float32, 0.5, 1.5)
    scale = gamma * jax.lax.rsqrt(var + 1e-5)
    shift = beta - mean * scale
    alpha = 0.25 + 0.05 * jax.random.normal(k6, (16,), jnp.float32)  # PReLU per-channel
    return dict(w=w, scale=scale, shift=shift, alpha=alpha)


# ----------------------------------------------------------------------------
# Pure-JAX reference (for correctness check)
# ----------------------------------------------------------------------------
def reference_forward(x_nchw, params):
    main = jax.lax.conv_general_dilated(
        x_nchw, params['w'], window_strides=(2, 2), padding=((1, 1), (1, 1)),
        dimension_numbers=('NCHW', 'OIHW', 'NCHW'),
        precision=jax.lax.Precision.HIGHEST)
    ext = jax.lax.reduce_window(x_nchw, -jnp.inf, jax.lax.max,
                                (1, 1, 2, 2), (1, 1, 2, 2), 'VALID')
    out = jnp.concatenate([main, ext], axis=1)
    scale = params['scale'].reshape(1, -1, 1, 1)
    shift = params['shift'].reshape(1, -1, 1, 1)
    alpha = params['alpha'].reshape(1, -1, 1, 1)
    y = out * scale + shift
    return jnp.where(y >= 0.0, y, alpha * y)


# ----------------------------------------------------------------------------
if __name__ == "__main__":
    key = jax.random.PRNGKey(0)
    kx, kp = jax.random.split(key)

    # CIFAR-like NCHW input at small shape, as the PyTorch module expects (Cin=3 fixed).
    x = jax.random.normal(kx, (2, 3, 16, 16), jnp.float32)
    params = init_params(kp)

    fwd = jax.jit(initial_block_forward)
    out = fwd(x, params)
    jax.block_until_ready(out)

    assert out.shape == (2, 16, 8, 8), out.shape
    assert bool(jnp.all(jnp.isfinite(out)))

    ref = reference_forward(x, params)
    err = float(jnp.max(jnp.abs(out - ref)))
    assert err < 5e-2, f"max abs err vs reference: {err}"

    print("KERNEL_OK")
</pallas_src>

<mosaic_0001>
module attributes {stable_mosaic.version = 11 : i64} {
  func.func @_initial_block_kernel(%arg0: i32, %arg1: i32, %arg2: memref<1x27x64xbf16, #tpu.memory_space<vmem>>, %arg3: memref<13x27xbf16, #tpu.memory_space<vmem>>, %arg4: memref<16x3xf32, #tpu.memory_space<vmem>>, %arg5: memref<1x16x64xf32, #tpu.memory_space<vmem>>) attributes {dimension_semantics = [#tpu.dimension_semantics<parallel>, #tpu.dimension_semantics<parallel>], iteration_bounds = array<i64: 2, 1>, scalar_prefetch = 0 : i64, scratch_operands = 0 : i64, tpu.core_type = #tpu.core_type<tc>, window_params = [{transform_indices = @transform_0, window_bounds = array<i64: 1, 27, 64>}, {pipeline_mode = #tpu.pipeline_mode<synchronous>, transform_indices = @transform_1, window_bounds = array<i64: 13, 27>}, {pipeline_mode = #tpu.pipeline_mode<synchronous>, transform_indices = @transform_2, window_bounds = array<i64: 16, 3>}, {transform_indices = @transform_3, window_bounds = array<i64: 1, 16, 64>}]} {
    %c0 = arith.constant 0 : index
    %c0_0 = arith.constant 0 : index
    %c0_1 = arith.constant 0 : index
    %0 = vector.load %arg2[%c0, %c0_0, %c0_1] : memref<1x27x64xbf16, #tpu.memory_space<vmem>>, vector<1x27x64xbf16>
    %1 = vector.shape_cast %0 : vector<1x27x64xbf16> to vector<27x64xbf16>
    %c0_2 = arith.constant 0 : index
    %c0_3 = arith.constant 0 : index
    %2 = vector.load %arg3[%c0_2, %c0_3] : memref<13x27xbf16, #tpu.memory_space<vmem>>, vector<13x27xbf16>
    %cst = arith.constant dense<0.000000e+00> : vector<13x64xf32>
    %3 = tpu.matmul %2, %1, %cst {dimension_numbers = #tpu.dot_dimension_numbers<[1], [0], [0], [1], [0, 0, 1, 1], [], []>} : vector<13x27xbf16>, vector<27x64xbf16>, vector<13x64xf32> -> vector<13x64xf32>
    %4 = vector.extract_strided_slice %1 {offsets = [12, 0], sizes = [3, 64], strides = [1, 1]} : vector<27x64xbf16> to vector<3x64xbf16>
    %5 = vector.extract_strided_slice %1 {offsets = [15, 0], sizes = [3, 64], strides = [1, 1]} : vector<27x64xbf16> to vector<3x64xbf16>
    %6 = arith.maximumf %4, %5 : vector<3x64xbf16>
    %7 = vector.extract_strided_slice %1 {offsets = [21, 0], sizes = [3, 64], strides = [1, 1]} : vector<27x64xbf16> to vector<3x64xbf16>
    %8 = vector.extract_strided_slice %1 {offsets = [24, 0], sizes = [3, 64], strides = [1, 1]} : vector<27x64xbf16> to vector<3x64xbf16>
    %9 = arith.maximumf %7, %8 : vector<3x64xbf16>
    %10 = arith.maximumf %6, %9 : vector<3x64xbf16>
    %11 = arith.extf %10 : vector<3x64xbf16> to vector<3x64xf32>
    %c0_4 = arith.constant 0 : index
    %c0_5 = arith.constant 0 : index
    %12 = vector.load %arg4[%c0_4, %c0_5] : memref<16x3xf32, #tpu.memory_space<vmem>>, vector<16x1xf32>
    %c0_6 = arith.constant 0 : index
    %c1 = arith.constant 1 : index
    %13 = vector.load %arg4[%c0_6, %c1] : memref<16x3xf32, #tpu.memory_space<vmem>>, vector<16x1xf32>
    %c0_7 = arith.constant 0 : index
    %c2 = arith.constant 2 : index
    %14 = vector.load %arg4[%c0_7, %c2] : memref<16x3xf32, #tpu.memory_space<vmem>>, vector<16x1xf32>
    %15 = vector.extract_strided_slice %13 {offsets = [0, 0], sizes = [13, 1], strides = [1, 1]} : vector<16x1xf32> to vector<13x1xf32>
    %16 = vector.broadcast %15 : vector<13x1xf32> to vector<13x64xf32>
    %17 = arith.addf %3, %16 : vector<13x64xf32>
    %18 = vector.extract_strided_slice %12 {offsets = [13, 0], sizes = [3, 1], strides = [1, 1]} : vector<16x1xf32> to vector<3x1xf32>
    %19 = vector.broadcast %18 : vector<3x1xf32> to vector<3x64xf32>
    %20 = arith.mulf %11, %19 : vector<3x64xf32>
    %21 = vector.extract_strided_slice %13 {offsets = [13, 0], sizes = [3, 1], strides = [1, 1]} : vector<16x1xf32> to vector<3x1xf32>
    %22 = vector.broadcast %21 : vector<3x1xf32> to vector<3x64xf32>
    %23 = arith.addf %20, %22 : vector<3x64xf32>
    %24 = tpu.concatenate %17, %23 in 0 : vector<13x64xf32>, vector<3x64xf32> -> vector<16x64xf32>
    %cst_8 = arith.constant 0.000000e+00 : f32
    %25 = vector.broadcast %cst_8 : f32 to vector<16x64xf32>
    %26 = arith.cmpf oge, %24, %25 : vector<16x64xf32>
    %27 = vector.broadcast %14 : vector<16x1xf32> to vector<16x64xf32>
    %28 = arith.mulf %27, %24 : vector<16x64xf32>
    %29 = arith.select %26, %24, %28 : vector<16x64xi1>, vector<16x64xf32>
    %c0_9 = arith.constant 0 : index
    %c0_10 = arith.constant 0 : index
    %c0_11 = arith.constant 0 : index
    %30 = vector.load %arg5[%c0_9, %c0_10, %c0_11] : memref<1x16x64xf32, #tpu.memory_space<vmem>>, vector<1x16x64xf32>
    %31 = vector.shape_cast %30 : vector<1x16x64xf32> to vector<16x64xf32>
    %32 = vector.shape_cast %29 : vector<16x64xf32> to vector<1x16x64xf32>
    tpu.vector_store %arg5[%c0_9, %c0_10, %c0_11], %32 {strides = array<i32>} : memref<1x16x64xf32, #tpu.memory_space<vmem>>, vector<1x16x64xf32>,
    return
  }
  func.func @transform_0(%arg0: i32, %arg1: i32) -> (i32, i32, i32) {
    %c0_i32 = arith.constant 0 : i32
    %c0_i32_0 = arith.constant 0 : i32
    return %arg0, %c0_i32, %arg1 : i32, i32, i32
  }
  func.func @transform_1(%arg0: i32, %arg1: i32) -> (i32, i32) {
    %c0_i32 = arith.constant 0 : i32
    %c0_i32_0 = arith.constant 0 : i32
    %c0_i32_1 = arith.constant 0 : i32
    return %c0_i32, %c0_i32_0 : i32, i32
  }
  func.func @transform_2(%arg0: i32, %arg1: i32) -> (i32, i32) {
    %c0_i32 = arith.constant 0 : i32
    %c0_i32_0 = arith.constant 0 : i32
    %c0_i32_1 = arith.constant 0 : i32
    return %c0_i32, %c0_i32_0 : i32, i32
  }
  func.func @transform_3(%arg0: i32, %arg1: i32) -> (i32, i32, i32) {
    %c0_i32 = arith.constant 0 : i32
    %c0_i32_0 = arith.constant 0 : i32
    return %arg0, %c0_i32, %arg1 : i32, i32, i32
  }
}

</mosaic_0001>

<llo_original>
// kernel: initial_block_forward.1
$region0: #{initial_block_forward.1}
  #allocation0 [shape = 'u32[]', space=smem, size = 0x4, offset = 0x4, fixed_abs, tag = 'smem constant byte address 0x4 - core index']
  #allocation1 [shape = 'u32[144,128]{1,0:T(1,128)}', space=vmem, size = 0x12000, scoped, tag = 'internal scratch']
  %s0 = inlined_call_operand.vmem [shape: bf16[2,27,64], index: 0, kind: input, shape index: {}]
  %s1 = inlined_call_operand.vmem [shape: bf16[13,27], index: 1, kind: input, shape index: {}]
  %s2 = inlined_call_operand.vmem [shape: f32[16,3], index: 2, kind: input, shape index: {}]
  %s3 = inlined_call_operand.vmem [shape: f32[2,16,64], index: 3, kind: output, shape index: {}]
  %s4 = sld [smem:[#allocation0]]
  $region45: #{initial_block_forward.1} parent=0
    _
  %s6 = ssub.s32 1, %s4
  %s7 = scalar_select 0, %s6, %s4
  loop: start=0, step=1, limit=4
  $region2: #{initial_block_forward.1} parent=0 // loop_pre_header
    _
  $region3: #{initial_block_forward.1} parent=0 // loop_header
    %s9 = sphi 0, %s13
    %p10 = scmp.ge.s32.totalorder %s9, 4
    %s16 = sphi 0, %s28
    %s17 = sphi 0, %s24
    %s18 = sphi 0, %s16
    %s19 = sphi 0, %s17
    %s20 = sphi 0, %s18
    %s21 = sphi 0, %s19
    %s33 = sphi 0, %s35
    %s36 = sphi 0, %s33
    %s37 = sphi 0, %s36
    %s53 = sphi 0, %s37
    %s57 = sphi 0, %s57
    %s59 = sphi 0, %s57
    %s60 = sphi 0, %s59
    %s74 = sphi 0, %s60
    %s78 = sphi 0, %s78
    %s80 = sphi 0, %s78
    %s81 = sphi 0, %s80
    %s95 = sphi 0, %s81
    %s103 = sphi 0, %s105
    %s106 = sphi 0, %s103
    %s107 = sphi 0, %s106
    %s123 = sphi 0, %s107
  $region4: #{initial_block_forward.1} parent=0 // loop_header_branch
    %12 = sbr.rel (%p10) target = $region8
  $region5: #{initial_block_forward.1} parent=0 // loop_body
    %s14 = ssub.s32 %s9, 1
    %s15 = ssub.s32 %s9, 2
    %s22 = sadd.s32 1, %s17
    %p23 = scmp.ge.s32.totalorder %s22, 1
    %s24 = scalar_select %p23, 0, %s22
    %s25 = sadd.s32 1, %s16
    %s26 = scalar_select %p23, %s25, %s16
    %p27 = scmp.ge.s32.totalorder %s26, 2
    %s28 = scalar_select %p27, 0, %s26
    %s29 = ssub.s32 %s16, %s28
    %s30 = ssub.s32 %s17, %s24
    %s31 = sor.u32 %s29, %s30
    %p32 = scmp.eq.s32.totalorder %s31, 0
    %s34 = sadd.s32 %s33, 1
    %s35 = scalar_select %p32, %s33, %s34
    %p38 = pneg %p32
    %p39 = scmp.eq.s32.totalorder %s9, 1
    %p40 = por %p38, %p39
    %p41 = scmp.ne.s32.totalorder %s33, %s36
    %p42 = scmp.eq.s32.totalorder %s9, 0
    %p43 = por %p41, %p42
    %p44 = scmp.ne.s32.totalorder %s33, %s36
    %p45 = scmp.eq.s32.totalorder %s14, 1
    %p46 = por %p44, %p45
    %p47 = scmp.ne.s32.totalorder %s36, %s37
    %p48 = scmp.eq.s32.totalorder %s14, 0
    %p49 = por %p47, %p48
    %p50 = scmp.ne.s32.totalorder %s36, %s37
    %p51 = scmp.eq.s32.totalorder %s15, 1
    %p52 = por %p50, %p51
    %p54 = scmp.ne.s32.totalorder %s37, %s53
    %p55 = scmp.eq.s32.totalorder %s15, 0
    %p56 = por %p54, %p55
    %s58 = sadd.s32 %s57, 1
    %p61 = scmp.eq.s32.totalorder %s9, 1
    %p62 = scmp.ne.s32.totalorder %s57, %s59
    %p63 = scmp.eq.s32.totalorder %s9, 0
    %p64 = por %p62, %p63
    %p65 = scmp.ne.s32.totalorder %s57, %s59
    %p66 = scmp.eq.s32.totalorder %s14, 1
    %p67 = por %p65, %p66
    %p68 = scmp.ne.s32.totalorder %s59, %s60
    %p69 = scmp.eq.s32.totalorder %s14, 0
    %p70 = por %p68, %p69
    %p71 = scmp.ne.s32.totalorder %s59, %s60
    %p72 = scmp.eq.s32.totalorder %s15, 1
    %p73 = por %p71, %p72
    %p75 = scmp.ne.s32.totalorder %s60, %s74
    %p76 = scmp.eq.s32.totalorder %s15, 0
    %p77 = por %p75, %p76
    %s79 = sadd.s32 %s78, 1
    %p82 = scmp.eq.s32.totalorder %s9, 1
    %p83 = scmp.ne.s32.totalorder %s78, %s80
    %p84 = scmp.eq.s32.totalorder %s9, 0
    %p85 = por %p83, %p84
    %p86 = scmp.ne.s32.totalorder %s78, %s80
    %p87 = scmp.eq.s32.totalorder %s14, 1
    %p88 = por %p86, %p87
    %p89 = scmp.ne.s32.totalorder %s80, %s81
    %p90 = scmp.eq.s32.totalorder %s14, 0
    %p91 = por %p89, %p90
    %p92 = scmp.ne.s32.totalorder %s80, %s81
    %p93 = scmp.eq.s32.totalorder %s15, 1
    %p94 = por %p92, %p93
    %p96 = scmp.ne.s32.totalorder %s81, %s95
    %p97 = scmp.eq.s32.totalorder %s15, 0
    %p98 = por %p96, %p97
    %s99 = ssub.s32 %s16, %s28
    %s100 = ssub.s32 %s17, %s24
    %s101 = sor.u32 %s99, %s100
    %p102 = scmp.eq.s32.totalorder %s101, 0
    %s104 = sadd.s32 %s103, 1
    %s105 = scalar_select %p102, %s103, %s104
    %p108 = pneg %p102
    %p109 = scmp.eq.s32.totalorder %s9, 1
    %p110 = por %p108, %p109
    %p111 = scmp.ne.s32.totalorder %s103, %s106
    %p112 = scmp.eq.s32.totalorder %s9, 0
    %p113 = por %p111, %p112
    %p114 = scmp.ne.s32.totalorder %s103, %s106
    %p115 = scmp.eq.s32.totalorder %s14, 1
    %p116 = por %p114, %p115
    %p117 = scmp.ne.s32.totalorder %s106, %s107
    %p118 = scmp.eq.s32.totalorder %s14, 0
    %p119 = por %p117, %p118
    %p120 = scmp.ne.s32.totalorder %s106, %s107
    %p121 = scmp.eq.s32.totalorder %s15, 1
    %p122 = por %p120, %p121
    %p124 = scmp.ne.s32.totalorder %s107, %s123
    %p125 = scmp.eq.s32.totalorder %s15, 0
    %p126 = por %p124, %p125
    %p127 = scmp.le.s32.totalorder 1, %s9
    %p128 = scmp.lt.s32.totalorder %s9, 3
    %p129 = pnand %p127, %p128
    %p130 = pneg %p129
    // Predicated region
    $region9: #{initial_block_forward.1} parent=5 // pred_check
      _
    $region10: #{initial_block_forward.1} parent=5 // pred_check_branch
      %132 = sbr.rel (%p129) target = $region12
    $region11: #{initial_block_forward.1} parent=5 // pred_region
      %s133 = ssub.s32 %s9, 1
      // Predicated region
      $region13: #{initial_block_forward.1} parent=11 // pred_check
        %p134 = pneg %p70
      $region14: #{initial_block_forward.1} parent=11 // pred_check_branch
        %136 = sbr.rel (%p134) target = $region16
      $region15: #{initial_block_forward.1} parent=11 // pred_region
        _
      $region16: #{initial_block_forward.1} parent=11 // pred_fallthru
        _
      // Predicated region
      $region17: #{initial_block_forward.1} parent=11 // pred_check
        %p137 = pneg %p91
      $region18: #{initial_block_forward.1} parent=11 // pred_check_branch
        %139 = sbr.rel (%p137) target = $region20
      $region19: #{initial_block_forward.1} parent=11 // pred_region
        _
      $region20: #{initial_block_forward.1} parent=11 // pred_fallthru
        _
    $region12: #{initial_block_forward.1} parent=5 // pred_fallthru
      _
    %p140 = scmp.lt.s32.totalorder %s9, 2
    // Predicated region
    $region21: #{initial_block_forward.1} parent=5 // pred_check
      %p141 = pneg %p140
    $region22: #{initial_block_forward.1} parent=5 // pred_check_branch
      %143 = sbr.rel (%p141) target = $region24
    $region23: #{initial_block_forward.1} parent=5 // pred_region
      // Predicated region
      $region25: #{initial_block_forward.1} parent=23 // pred_check
        %p144 = pneg %p43
      $region26: #{initial_block_forward.1} parent=23 // pred_check_branch
        %146 = sbr.rel (%p144) target = $region28
      $region27: #{initial_block_forward.1} parent=23 // pred_region
        %p147 = scmp.lt.s32.totalorder %s16, 1
        %s148 = scalar_select %p147, %s16, 1
        %p149 = scmp.lt.s32.totalorder %s17, 0
        %s150 = scalar_select %p149, %s17, 0
        %s151 = smul.addr %s148, 4
        %s152 = sadd.s32 %s150, %s151
        %s153 = smul.addr %s152, 4
        %s154 = scalar_lea.vmem %s0, %s153
      $region28: #{initial_block_forward.1} parent=23 // pred_fallthru
        _
    $region24: #{initial_block_forward.1} parent=5 // pred_fallthru
      _
    %p155 = scmp.le.s32.totalorder 1, %s9
    %p156 = scmp.lt.s32.totalorder %s9, 3
    %p157 = pnand %p155, %p156
    %p158 = pneg %p157
    // Predicated region
    $region29: #{initial_block_forward.1} parent=5 // pred_check
      _
    $region30: #{initial_block_forward.1} parent=5 // pred_check_branch
      %160 = sbr.rel (%p157) target = $region32
    $region31: #{initial_block_forward.1} parent=5 // pred_region
      %s161 = ssub.s32 %s9, 1
      %p162 = scmp.lt.s32.totalorder %s18, 1
      %s163 = scalar_select %p162, %s18, 1
      %p164 = scmp.lt.s32.totalorder %s19, 0
      %s165 = scalar_select %p164, %s19, 0
      %s166 = smul.addr %s163, 4
      %s167 = sadd.s32 %s165, %s166
      %s168 = smul.addr %s167, 4
      %s169 = scalar_lea.vmem %s0, %s168
      %p170 = pneg %p49
      %p171 = pneg %p46
      %p172 = pneg %p70
      %p173 = pneg %p67
      %p174 = pneg %p91
      %p175 = pneg %p88
      %p176 = pneg %p119
      %p177 = pneg %p116
      %p178 = scmp.lt.s32.totalorder %s18, 1
      %s179 = scalar_select %p178, %s18, 1
      %p180 = scmp.lt.s32.totalorder %s19, 0
      %s181 = scalar_select %p180, %s19, 0
      %s182 = smul.addr %s179, 2
      %s183 = sadd.s32 %s181, %s182
      %s184 = smul.addr %s183, 8
      %s185 = scalar_lea.vmem %s3, %s184
      %p186 = scmp.lt.s32.totalorder %s18, 1
      %s187 = scalar_select %p186, %s18, 1
      %p188 = scmp.lt.s32.totalorder %s19, 0
      %s189 = scalar_select %p188, %s19, 0
      %s190 = smul.addr %s187, 4
      %s191 = sadd.s32 %s189, %s190
      %s192 = smul.addr %s191, 4
      %s193 = scalar_lea.vmem %s0, %s192
      %p194 = scmp.lt.s32.totalorder %s18, 1
      %s195 = scalar_select %p194, %s18, 1
      %p196 = scmp.lt.s32.totalorder %s19, 0
      %s197 = scalar_select %p196, %s19, 0
      %s198 = smul.addr %s195, 2
      %s199 = sadd.s32 %s197, %s198
      %s200 = smul.addr %s199, 8
      %s201 = scalar_lea.vmem %s3, %s200
      %v203 = vld [vmem:[%s193] sm:$0xf]
      %v204 = vld [vmem:[%s193 + $0x4] sm:$0xf]
      %v205 = vld [vmem:[%s193 + $0x8] sm:$0xf]
      %v206 = vld [vmem:[%s193 + $0xc] sm:$0x3]
      %v207 = vld [vmem:[%s1] sm:$0xf]
      %v208 = vld [vmem:[%s1 + $0x4] sm:$0x7]
      %vm209 = vsmask.f32 2304
      %vm210 = vsmask.f32 6416
      %vm211 = vmor %vm209, %vm210
      %v213 = vshrl.u32 %v204, 16
      %v215 = vrot.slane %v213, 5
      %v216 = vrot.slane %v215, 4
      %v218 = vshrl.u32 %v205, 16
      %v220 = vrot.slane %v218, 5
      %v221 = vshll.u32 %v205, 16
      %v223 = vrot.slane %v221, 6
      %v224 = vor.u32 %v220, %v223
      %v225 = vsel %vm211, %v216, %v224
      %v227 = vmax.bf16 %v204, %v225
      %v229 = vshrl.u32 %v206, 16
      %v231 = vrot.slane %v229, 5
      %v232 = vshll.u32 %v206, 16
      %v234 = vrot.slane %v232, 6
      %v235 = vor.u32 %v231, %v234
      %v237 = vmax.bf16 %v205, %v235
      %v239 = vshrl.u32 %v237, 16
      %v241 = vrot.slane %v239, 4
      %v242 = vshll.u32 %v237, 16
      %v244 = vrot.slane %v242, 5
      %v245 = vor.u32 %v241, %v244
      %v246 = vrot.slane %v245, 4
      %v248 = vmax.bf16 %v227, %v246
      %v249 = vunpack.c.l.bf16 %v248
      %v250 = vld [vmem:[%s2 + $0x8] sm:$0xff]
      %v251 = vld [vmem:[%s2] sm:$0xff]
      %253 = vset.pattern.permute.xlu0 1
      %254 = vperm.xlu0 %253, %v251
      %v255 = vpop.permute.xlu0 %254
      %258 = vset.pattern.permute.xlu0 1
      %259 = vperm.xlu0 %258, %v250
      %v260 = vpop.permute.xlu0 %259
      %v264 = vunpack.c.l.b16 %v207
      %v265 = vunpack.c.l.b16 %v208
      %v266 = vpack.c.b16 %v265, %v264
      %v271 = vunpack.c.l.b16 %v203
      %v272 = vunpack.c.l.b16 %v204
      %v273 = vunpack.c.l.b16 %v205
      %v274 = vunpack.c.l.b16 %v206
      %v275 = vpack.c.b16 %v272, %v271
      %v276 = vpack.c.b16 %v274, %v273
      %vm278 = vcmask 220160
      %v280 = vsel %vm278, %v266, 0
      %vm282 = vcmask 1044480
      %vm283 = vcmask 1045504
      %v284 = vsel %vm282, 4294967295, 65535
      %v285 = vsel %vm283, %v284, 0
      %v287 = vand.u32 %v276, %v285
      %289 = vmatprep.subr.bf16.mxu0 0
      %290 = vmatpush1.bf16.msra.mxu0 %v275
      %291 = vmatprep.subr.bf16.mxu0 0
      %292 = vmatpush1.bf16.msra.mxu0 %v287
      %293 = vmatprep.subr.bf16.mxu0 0
      %294 = vmatpush1.bf16.msra.mxu0 0
      %295 = vmatprep.subr.bf16.mxu0 0
      %296 = vmatpush1.bf16.msra.mxu0 0
      %297 = vmatprep.subr.bf16.mxu0 0
      %298 = vmatpush1.bf16.msra.mxu0 0
      %299 = vmatprep.subr.bf16.mxu0 0
      %300 = vmatpush1.bf16.msra.mxu0 0
      %301 = vmatprep.subr.bf16.mxu0 0
      %302 = vmatpush1.bf16.msra.mxu0 0
      %303 = vmatprep.subr.bf16.mxu0 0
      %304 = vmatpush1.bf16.msra.mxu0 0
      %305 = vmatprep.subr.bf16.mxu0 0
      %306 = vmatpush1.bf16.msra.mxu0 0
      %307 = vmatprep.subr.bf16.mxu0 0
      %308 = vmatpush1.bf16.msra.mxu0 0
      %309 = vmatprep.subr.bf16.mxu0 0
      %310 = vmatpush1.bf16.msra.mxu0 0
      %311 = vmatprep.subr.bf16.mxu0 0
      %312 = vmatpush1.bf16.msra.mxu0 0
      %313 = vmatprep.subr.bf16.mxu0 0
      %314 = vmatpush1.bf16.msra.mxu0 0
      %315 = vmatprep.subr.bf16.mxu0 0
      %316 = vmatpush1.bf16.msra.mxu0 0
      %317 = vmatprep.subr.bf16.mxu0 0
      %318 = vmatpush1.bf16.msra.mxu0 0
      %319 = vmatprep.subr.bf16.mxu0 0
      %320 = vmatpush1.bf16.msra.mxu0 0
      %321 = vmatprep.mubr.bf16.mxu0 0
      %322 = vmatmul.mubr.bf16.gmra.mrb[0].mxu0 %v280
      %v323 = vpop.f32.mrb[0].mxu0
      %v324 = vadd.f32 %v255, %v323
      %v325 = vpop.f32.mrb[0].mxu0
      %v326 = vpop.f32.mrb[0].mxu0
      %v327 = vadd.f32 %v260, %v326
      %v328 = vpop.f32.mrb[0].mxu0
      %329 = vdwg.mxu0
      %330 = vset.pattern.permute.xlu0 0
      %331 = vperm.xlu0 %330, %v250
      %v332 = vpop.permute.xlu0 %331
      %v333 = vrot.slane %v332, 1
      %v335 = vmul.f32 %v249, %v333
      %v336 = vrot.slane %v260, 1
      %v338 = vadd.f32 %v335, %v336
      %v340 = vrot.slane %v338, 7
      %v342 = vsel %vm282, %v327, %v340
      %vm343 = vcmp.ge.f32.partialorder %v324, 0.0
      %vm344 = vcmp.ge.f32.partialorder %v342, 0.0
      %345 = vset.pattern.permute.xlu0 2
      %346 = vperm.xlu0 %345, %v251
      %v347 = vpop.permute.xlu0 %346
      %349 = vset.pattern.permute.xlu0 2
      %350 = vperm.xlu0 %349, %v250
      %v351 = vpop.permute.xlu0 %350
      %v353 = vmul.f32 %v347, %v324
      %v354 = vmul.f32 %v351, %v342
      %v355 = vsel %vm343, %v324, %v353
      %v356 = vsel %vm344, %v342, %v354
      %vm357 = vcmask 523264
      %358 = vst.msk [vmem:[%s201] sm:$0xff] %vm357, %v355
      %359 = vst.msk [vmem:[%s201 + $0x8] sm:$0xff] %vm357, %v356
      %p360 = scmp.lt.s32.totalorder %s18, 1
      %s361 = scalar_select %p360, %s18, 1
      %p362 = scmp.lt.s32.totalorder %s19, 0
      %s363 = scalar_select %p362, %s19, 0
      %s364 = smul.addr %s361, 2
      %s365 = sadd.s32 %s363, %s364
      %s366 = smul.addr %s365, 8
      %s367 = scalar_lea.vmem %s3, %s366
      // Predicated region
      $region33: #{initial_block_forward.1} parent=31 // pred_check
        %p368 = pneg %p116
      $region34: #{initial_block_forward.1} parent=31 // pred_check_branch
        %370 = sbr.rel (%p368) target = $region36
      $region35: #{initial_block_forward.1} parent=31 // pred_region
        _
      $region36: #{initial_block_forward.1} parent=31 // pred_fallthru
        _
    $region32: #{initial_block_forward.1} parent=5 // pred_fallthru
      _
    %p371 = scmp.le.s32.totalorder 2, %s9
    // Predicated region
    $region37: #{initial_block_forward.1} parent=5 // pred_check
      %p372 = pneg %p371
    $region38: #{initial_block_forward.1} parent=5 // pred_check_branch
      %374 = sbr.rel (%p372) target = $region40
    $region39: #{initial_block_forward.1} parent=5 // pred_region
      %s375 = ssub.s32 %s9, 2
      // Predicated region
      $region41: #{initial_block_forward.1} parent=39 // pred_check
        %p376 = pneg %p122
      $region42: #{initial_block_forward.1} parent=39 // pred_check_branch
        %378 = sbr.rel (%p376) target = $region44
      $region43: #{initial_block_forward.1} parent=39 // pred_region
        %p379 = scmp.lt.s32.totalorder %s20, 1
        %s380 = scalar_select %p379, %s20, 1
        %p381 = scmp.lt.s32.totalorder %s21, 0
        %s382 = scalar_select %p381, %s21, 0
        %s383 = smul.addr %s380, 2
        %s384 = sadd.s32 %s382, %s383
        %s385 = smul.addr %s384, 8
        %s386 = scalar_lea.vmem %s3, %s385
      $region44: #{initial_block_forward.1} parent=39 // pred_fallthru
        _
    $region40: #{initial_block_forward.1} parent=5 // pred_fallthru
      _
  $region6: #{initial_block_forward.1} parent=0 // loop_footer
    %s13 = sadd.s32 1, %s9
  $region7: #{initial_block_forward.1} parent=0 // loop_footer_branch
    %8 = sbr.rel target = $region3
  $region8: #{initial_block_forward.1} parent=0 // loop_exit
    _

</llo_original>
